<compile_context>
chip_gen: v5e
topology: v5e:2x2
jax: 0.10.0
libtpu: 0.0.40
codegen_flags: <defaults>
</compile_context>

<pallas_src>
import functools

import jax
import jax.numpy as jnp
from jax import lax
from jax.experimental import pallas as pl
from jax.experimental.pallas import tpu as pltpu


def _conv_lrelu_kernel(x_ref, w_ref, b_ref, o_ref, xp_ref, *,
                       H, W, Cin, kH, rows, pad, neg_slope):
    """One (image, output-row-block) grid step.

    x_ref : (1, Cin, H, W)        raw NCHW image block (no XLA-side glue).
    w_ref : (Cin*kH*W, Wo*Cout)   banded-Toeplitz weights (W padding folded in).
    b_ref : (1, Wo*Cout)          bias tiled over Wo.
    o_ref : (1, rows, Wo*Cout)    lane-dense output row block.
    xp_ref: (Cin, H+2*pad, W)     VMEM scratch: H-zero-padded channel planes.
    """
    # In-kernel zero padding along H only (W padding lives in the band
    # weights, so no lane-offset stores are needed).
    if pad > 0:
        halo = jnp.zeros((Cin, pad, W), xp_ref.dtype)
        xp_ref[:, 0:pad, :] = halo
        xp_ref[:, pad + H:pad + H + pad, :] = halo
    xp_ref[:, pad:pad + H, :] = x_ref[0].astype(xp_ref.dtype)

    # Stage a single deep-K lhs (rows, Cin*kH*W) and do ONE MXU matmul
    # (replaces 9 accumulated K=Cin dots and their relayouting reshapes).
    row0 = pl.multiple_of(pl.program_id(1) * rows, rows)
    parts = []
    for ci in range(Cin):                     # static unroll: Cin*kH small slices
        for kh in range(kH):
            parts.append(xp_ref[ci, pl.ds(row0 + kh, rows), :])   # (rows, W)
    lhs = jnp.concatenate(parts, axis=-1)                          # (rows, Cin*kH*W)

    # f32 operands keep PyTorch Conv2d numerics; cast lhs/w to bf16 here for
    # ~3x MXU throughput if accuracy allows (keep preferred_element_type=f32).
    y = jnp.dot(lhs, w_ref[...], preferred_element_type=jnp.float32)  # (rows, Wo*Cout)
    y = y + b_ref[...]                                # f32 epilogue (v5e-safe)
    y = jnp.maximum(y, neg_slope * y)                 # LeakyReLU: vmul + vmax
    o_ref[0] = y.astype(o_ref.dtype)


def _build_band_weights(weight, Wi, Wo, stride, padding):
    """(Cout, Cin, kH, kW) -> banded matrix (Cin*kH*Wi, Wo*Cout).

    band[(ci*kH+kh)*Wi + w, wo*Cout + co] = weight[co, ci, kh, w - wo*stride + padding]
    if that kw index is in [0, kW), else 0.  Restricting w to [0, Wi) is exactly
    the zero W-padding of the convolution.
    """
    Cout, Cin, kH, kW = weight.shape
    w_idx = jnp.arange(Wi)
    wo_idx = jnp.arange(Wo)
    kw = w_idx[:, None] - wo_idx[None, :] * stride + padding          # (Wi, Wo)
    valid = (kw >= 0) & (kw < kW)
    kw_c = jnp.clip(kw, 0, kW - 1)
    w_t = jnp.transpose(weight, (1, 2, 3, 0))                         # (Cin,kH,kW,Cout)
    band = w_t[:, :, kw_c, :]                                         # (Cin,kH,Wi,Wo,Cout)
    band = band * valid[None, None, :, :, None]
    return band.reshape(Cin * kH * Wi, Wo * Cout).astype(jnp.float32)


def conv_block_forward(x, weight, bias, *, stride=1, padding=1, neg_slope=0.01):
    """x: (N, Cin, H, W) f32; weight: (Cout, Cin, kH, kW); bias: (Cout,)."""
    N, Cin, H, W = x.shape
    Cout, Cin2, kH, kW = weight.shape
    assert Cin2 == Cin
    Ho = (H + 2 * padding - kH) // stride + 1
    Wo = (W + 2 * padding - kW) // stride + 1
    # The kernel always produces H-stride-1 rows (W stride is in the bands);
    # for stride>1 the wrapper subsamples rows afterwards.
    # TODO(synk): for stride>1 this overcomputes H rows by ~stride x; an
    # in-kernel strided row gather would avoid it but is untested on Mosaic.
    Ho_full = H + 2 * padding - kH + 1

    band = _build_band_weights(weight, W, Wo, stride, padding)    # (Cin*kH*W, Wo*Cout)
    b_flat = jnp.tile(bias, Wo).reshape(1, Wo * Cout).astype(jnp.float32)

    # Second parallel grid axis: output-row blocks (v7x has 2 TCs; also adds
    # pipeline depth on single-TC v5e/v6e).  Keep blocks sublane-aligned.
    row_blocks = 2 if (Ho_full % 16 == 0) else 1
    rows = Ho_full // row_blocks

    K = Cin * kH * W
    Nlane = Wo * Cout

    kernel = functools.partial(_conv_lrelu_kernel, H=H, W=W, Cin=Cin, kH=kH,
                               rows=rows, pad=padding, neg_slope=neg_slope)

    out = pl.pallas_call(
        kernel,
        out_shape=jax.ShapeDtypeStruct((N, Ho_full, Nlane), x.dtype),
        grid_spec=pltpu.PrefetchScalarGridSpec(
            num_scalar_prefetch=0,
            grid=(N, row_blocks),
            in_specs=[
                # Raw NCHW image; block index constant along the row axis so
                # Pallas does not re-DMA it between row blocks.
                pl.BlockSpec((1, Cin, H, W), lambda n, r: (n, 0, 0, 0)),
                pl.BlockSpec((K, Nlane), lambda n, r: (0, 0)),
                pl.BlockSpec((1, Nlane), lambda n, r: (0, 0)),
            ],
            out_specs=pl.BlockSpec((1, rows, Nlane), lambda n, r: (n, r, 0)),
            scratch_shapes=[
                pltpu.VMEM((Cin, H + 2 * padding, W), jnp.float32),
            ]),
        compiler_params=pltpu.CompilerParams(
            dimension_semantics=("parallel", "parallel")),
    )(x, band, b_flat)

    if stride > 1:
        out = out[:, ::stride][:, :Ho]
    # Only remaining XLA layout op: small output back to NCHW to match the
    # PyTorch module (an NHWC-native pipeline would keep `out` as-is).
    return out.reshape(N, Ho, Wo, Cout).transpose(0, 3, 1, 2)


def _reference(x, weight, bias, stride, padding, neg_slope=0.01):
    y = lax.conv_general_dilated(
        x, weight,
        window_strides=(stride, stride),
        padding=[(padding, padding), (padding, padding)],
        dimension_numbers=("NCHW", "OIHW", "NCHW"),
    ) + bias.reshape(1, -1, 1, 1)
    return jnp.where(y >= 0, y, neg_slope * y)


if __name__ == "__main__":
    # ConvBlock(in_channels=4, out_channels=8, kernel_size=3, stride=1)
    N, Cin, H, W = 2, 4, 16, 16
    Cout, kH, kW, stride, padding = 8, 3, 3, 1, 1

    key = jax.random.PRNGKey(0)
    kx, kw_, kb = jax.random.split(key, 3)

    x = jax.random.normal(kx, (N, Cin, H, W), dtype=jnp.float32)
    # Deterministic PyTorch-like uniform fan-in init.
    fan_in = Cin * kH * kW
    bound = 1.0 / (fan_in ** 0.5)
    weight = jax.random.uniform(kw_, (Cout, Cin, kH, kW), jnp.float32,
                                -bound, bound)
    bias = jax.random.uniform(kb, (Cout,), jnp.float32, -bound, bound)

    fwd = jax.jit(functools.partial(conv_block_forward,
                                    stride=stride, padding=padding))
    y = jax.block_until_ready(fwd(x, weight, bias))

    y_ref = _reference(x, weight, bias, stride, padding)
    assert y.shape == (N, Cout, H, W)
    # Small slack for MXU f32 accumulation-order differences vs. the XLA conv.
    assert jnp.allclose(y, y_ref, atol=1e-4, rtol=1e-4)

    print("KERNEL_OK")
</pallas_src>

<mosaic_0001>
module attributes {stable_mosaic.version = 11 : i64} {
  func.func @_conv_lrelu_kernel(%arg0: i32, %arg1: i32, %arg2: memref<1x4x16x16xf32, #tpu.memory_space<vmem>>, %arg3: memref<192x128xf32, #tpu.memory_space<vmem>>, %arg4: memref<1x128xf32, #tpu.memory_space<vmem>>, %arg5: memref<1x8x128xf32, #tpu.memory_space<vmem>>, %arg6: memref<4x18x16xf32, #tpu.memory_space<vmem>>) attributes {dimension_semantics = [#tpu.dimension_semantics<parallel>, #tpu.dimension_semantics<parallel>], iteration_bounds = array<i64: 2, 2>, scalar_prefetch = 0 : i64, scratch_operands = 1 : i64, tpu.core_type = #tpu.core_type<tc>, window_params = [{transform_indices = @transform_0, window_bounds = array<i64: 1, 4, 16, 16>}, {pipeline_mode = #tpu.pipeline_mode<synchronous>, transform_indices = @transform_1, window_bounds = array<i64: 192, 128>}, {pipeline_mode = #tpu.pipeline_mode<synchronous>, transform_indices = @transform_2, window_bounds = array<i64: 1, 128>}, {transform_indices = @transform_3, window_bounds = array<i64: 1, 8, 128>}]} {
    %cst = arith.constant 0.000000e+00 : f32
    %0 = vector.broadcast %cst : f32 to vector<4x1x16xf32>
    %c0 = arith.constant 0 : index
    %c0_0 = arith.constant 0 : index
    %c0_1 = arith.constant 0 : index
    %1 = vector.load %arg6[%c0, %c0_0, %c0_1] : memref<4x18x16xf32, #tpu.memory_space<vmem>>, vector<4x1x16xf32>
    tpu.vector_store %arg6[%c0, %c0_0, %c0_1], %0 {strides = array<i32>} : memref<4x18x16xf32, #tpu.memory_space<vmem>>, vector<4x1x16xf32>,
    %c0_2 = arith.constant 0 : index
    %c17 = arith.constant 17 : index
    %c0_3 = arith.constant 0 : index
    %2 = vector.load %arg6[%c0_2, %c17, %c0_3] : memref<4x18x16xf32, #tpu.memory_space<vmem>>, vector<4x1x16xf32>
    tpu.vector_store %arg6[%c0_2, %c17, %c0_3], %0 {strides = array<i32>} : memref<4x18x16xf32, #tpu.memory_space<vmem>>, vector<4x1x16xf32>,
    %c0_4 = arith.constant 0 : index
    %c0_5 = arith.constant 0 : index
    %c0_6 = arith.constant 0 : index
    %c0_7 = arith.constant 0 : index
    %3 = vector.load %arg2[%c0_4, %c0_5, %c0_6, %c0_7] : memref<1x4x16x16xf32, #tpu.memory_space<vmem>>, vector<1x4x16x16xf32>
    %4 = vector.shape_cast %3 : vector<1x4x16x16xf32> to vector<4x16x16xf32>
    %c0_8 = arith.constant 0 : index
    %c1 = arith.constant 1 : index
    %c0_9 = arith.constant 0 : index
    %5 = vector.load %arg6[%c0_8, %c1, %c0_9] : memref<4x18x16xf32, #tpu.memory_space<vmem>>, vector<4x16x16xf32>
    tpu.vector_store %arg6[%c0_8, %c1, %c0_9], %4 {strides = array<i32>} : memref<4x18x16xf32, #tpu.memory_space<vmem>>, vector<4x16x16xf32>,
    %c8_i32 = arith.constant 8 : i32
    %6 = arith.muli %arg1, %c8_i32 : i32
    %7 = tpu.assume_multiple %6, 8 : i32
    %c0_i32 = arith.constant 0 : i32
    %8 = arith.addi %7, %c0_i32 : i32
    %c0_10 = arith.constant 0 : index
    %9 = arith.index_cast %8 : i32 to index
    %c0_11 = arith.constant 0 : index
    %10 = vector.load %arg6[%c0_10, %9, %c0_11] : memref<4x18x16xf32, #tpu.memory_space<vmem>>, vector<1x8x16xf32>
    %11 = vector.shape_cast %10 : vector<1x8x16xf32> to vector<8x16xf32>
    %c1_i32 = arith.constant 1 : i32
    %12 = arith.addi %7, %c1_i32 : i32
    %c0_12 = arith.constant 0 : index
    %13 = arith.index_cast %12 : i32 to index
    %c0_13 = arith.constant 0 : index
    %14 = vector.load %arg6[%c0_12, %13, %c0_13] : memref<4x18x16xf32, #tpu.memory_space<vmem>>, vector<1x8x16xf32>
    %15 = vector.shape_cast %14 : vector<1x8x16xf32> to vector<8x16xf32>
    %c2_i32 = arith.constant 2 : i32
    %16 = arith.addi %7, %c2_i32 : i32
    %c0_14 = arith.constant 0 : index
    %17 = arith.index_cast %16 : i32 to index
    %c0_15 = arith.constant 0 : index
    %18 = vector.load %arg6[%c0_14, %17, %c0_15] : memref<4x18x16xf32, #tpu.memory_space<vmem>>, vector<1x8x16xf32>
    %19 = vector.shape_cast %18 : vector<1x8x16xf32> to vector<8x16xf32>
    %c0_i32_16 = arith.constant 0 : i32
    %20 = arith.addi %7, %c0_i32_16 : i32
    %c1_17 = arith.constant 1 : index
    %21 = arith.index_cast %20 : i32 to index
    %c0_18 = arith.constant 0 : index
    %22 = vector.load %arg6[%c1_17, %21, %c0_18] : memref<4x18x16xf32, #tpu.memory_space<vmem>>, vector<1x8x16xf32>
    %23 = vector.shape_cast %22 : vector<1x8x16xf32> to vector<8x16xf32>
    %c1_i32_19 = arith.constant 1 : i32
    %24 = arith.addi %7, %c1_i32_19 : i32
    %c1_20 = arith.constant 1 : index
    %25 = arith.index_cast %24 : i32 to index
    %c0_21 = arith.constant 0 : index
    %26 = vector.load %arg6[%c1_20, %25, %c0_21] : memref<4x18x16xf32, #tpu.memory_space<vmem>>, vector<1x8x16xf32>
    %27 = vector.shape_cast %26 : vector<1x8x16xf32> to vector<8x16xf32>
    %c2_i32_22 = arith.constant 2 : i32
    %28 = arith.addi %7, %c2_i32_22 : i32
    %c1_23 = arith.constant 1 : index
    %29 = arith.index_cast %28 : i32 to index
    %c0_24 = arith.constant 0 : index
    %30 = vector.load %arg6[%c1_23, %29, %c0_24] : memref<4x18x16xf32, #tpu.memory_space<vmem>>, vector<1x8x16xf32>
    %31 = vector.shape_cast %30 : vector<1x8x16xf32> to vector<8x16xf32>
    %c0_i32_25 = arith.constant 0 : i32
    %32 = arith.addi %7, %c0_i32_25 : i32
    %c2 = arith.constant 2 : index
    %33 = arith.index_cast %32 : i32 to index
    %c0_26 = arith.constant 0 : index
    %34 = vector.load %arg6[%c2, %33, %c0_26] : memref<4x18x16xf32, #tpu.memory_space<vmem>>, vector<1x8x16xf32>
    %35 = vector.shape_cast %34 : vector<1x8x16xf32> to vector<8x16xf32>
    %c1_i32_27 = arith.constant 1 : i32
    %36 = arith.addi %7, %c1_i32_27 : i32
    %c2_28 = arith.constant 2 : index
    %37 = arith.index_cast %36 : i32 to index
    %c0_29 = arith.constant 0 : index
    %38 = vector.load %arg6[%c2_28, %37, %c0_29] : memref<4x18x16xf32, #tpu.memory_space<vmem>>, vector<1x8x16xf32>
    %39 = vector.shape_cast %38 : vector<1x8x16xf32> to vector<8x16xf32>
    %c2_i32_30 = arith.constant 2 : i32
    %40 = arith.addi %7, %c2_i32_30 : i32
    %c2_31 = arith.constant 2 : index
    %41 = arith.index_cast %40 : i32 to index
    %c0_32 = arith.constant 0 : index
    %42 = vector.load %arg6[%c2_31, %41, %c0_32] : memref<4x18x16xf32, #tpu.memory_space<vmem>>, vector<1x8x16xf32>
    %43 = vector.shape_cast %42 : vector<1x8x16xf32> to vector<8x16xf32>
    %c0_i32_33 = arith.constant 0 : i32
    %44 = arith.addi %7, %c0_i32_33 : i32
    %c3 = arith.constant 3 : index
    %45 = arith.index_cast %44 : i32 to index
    %c0_34 = arith.constant 0 : index
    %46 = vector.load %arg6[%c3, %45, %c0_34] : memref<4x18x16xf32, #tpu.memory_space<vmem>>, vector<1x8x16xf32>
    %47 = vector.shape_cast %46 : vector<1x8x16xf32> to vector<8x16xf32>
    %c1_i32_35 = arith.constant 1 : i32
    %48 = arith.addi %7, %c1_i32_35 : i32
    %c3_36 = arith.constant 3 : index
    %49 = arith.index_cast %48 : i32 to index
    %c0_37 = arith.constant 0 : index
    %50 = vector.load %arg6[%c3_36, %49, %c0_37] : memref<4x18x16xf32, #tpu.memory_space<vmem>>, vector<1x8x16xf32>
    %51 = vector.shape_cast %50 : vector<1x8x16xf32> to vector<8x16xf32>
    %c2_i32_38 = arith.constant 2 : i32
    %52 = arith.addi %7, %c2_i32_38 : i32
    %c3_39 = arith.constant 3 : index
    %53 = arith.index_cast %52 : i32 to index
    %c0_40 = arith.constant 0 : index
    %54 = vector.load %arg6[%c3_39, %53, %c0_40] : memref<4x18x16xf32, #tpu.memory_space<vmem>>, vector<1x8x16xf32>
    %55 = vector.shape_cast %54 : vector<1x8x16xf32> to vector<8x16xf32>
    %56 = tpu.concatenate %11, %15, %19, %23, %27, %31, %35, %39, %43, %47, %51, %55 in 1 : vector<8x16xf32>, vector<8x16xf32>, vector<8x16xf32>, vector<8x16xf32>, vector<8x16xf32>, vector<8x16xf32>, vector<8x16xf32>, vector<8x16xf32>, vector<8x16xf32>, vector<8x16xf32>, vector<8x16xf32>, vector<8x16xf32> -> vector<8x192xf32>
    %c0_41 = arith.constant 0 : index
    %c0_42 = arith.constant 0 : index
    %57 = vector.load %arg3[%c0_41, %c0_42] : memref<192x128xf32, #tpu.memory_space<vmem>>, vector<192x128xf32>
    %cst_43 = arith.constant dense<0.000000e+00> : vector<8x128xf32>
    %58 = tpu.matmul %56, %57, %cst_43 {dimension_numbers = #tpu.dot_dimension_numbers<[1], [0], [0], [1], [0, 0, 1, 1], [], []>} : vector<8x192xf32>, vector<192x128xf32>, vector<8x128xf32> -> vector<8x128xf32>
    %c0_44 = arith.constant 0 : index
    %c0_45 = arith.constant 0 : index
    %59 = vector.load %arg4[%c0_44, %c0_45] : memref<1x128xf32, #tpu.memory_space<vmem>>, vector<1x128xf32>
    %60 = vector.broadcast %59 : vector<1x128xf32> to vector<8x128xf32>
    %61 = arith.addf %58, %60 : vector<8x128xf32>
    %cst_46 = arith.constant 0.00999999977 : f32
    %62 = vector.broadcast %cst_46 : f32 to vector<8x128xf32>
    %63 = arith.mulf %62, %61 : vector<8x128xf32>
    %64 = arith.maximumf %61, %63 : vector<8x128xf32>
    %c0_47 = arith.constant 0 : index
    %c0_48 = arith.constant 0 : index
    %c0_49 = arith.constant 0 : index
    %65 = vector.load %arg5[%c0_47, %c0_48, %c0_49] : memref<1x8x128xf32, #tpu.memory_space<vmem>>, vector<1x8x128xf32>
    %66 = vector.shape_cast %65 : vector<1x8x128xf32> to vector<8x128xf32>
    %67 = vector.shape_cast %64 : vector<8x128xf32> to vector<1x8x128xf32>
    tpu.vector_store %arg5[%c0_47, %c0_48, %c0_49], %67 {strides = array<i32>} : memref<1x8x128xf32, #tpu.memory_space<vmem>>, vector<1x8x128xf32>,
    return
  }
  func.func @transform_0(%arg0: i32, %arg1: i32) -> (i32, i32, i32, i32) {
    %c0_i32 = arith.constant 0 : i32
    %c0_i32_0 = arith.constant 0 : i32
    %c0_i32_1 = arith.constant 0 : i32
    %c0_i32_2 = arith.constant 0 : i32
    return %arg0, %c0_i32, %c0_i32_0, %c0_i32_1 : i32, i32, i32, i32
  }
  func.func @transform_1(%arg0: i32, %arg1: i32) -> (i32, i32) {
    %c0_i32 = arith.constant 0 : i32
    %c0_i32_0 = arith.constant 0 : i32
    %c0_i32_1 = arith.constant 0 : i32
    return %c0_i32, %c0_i32_0 : i32, i32
  }
  func.func @transform_2(%arg0: i32, %arg1: i32) -> (i32, i32) {
    %c0_i32 = arith.constant 0 : i32
    %c0_i32_0 = arith.constant 0 : i32
    %c0_i32_1 = arith.constant 0 : i32
    return %c0_i32, %c0_i32_0 : i32, i32
  }
  func.func @transform_3(%arg0: i32, %arg1: i32) -> (i32, i32, i32) {
    %c0_i32 = arith.constant 0 : i32
    %c0_i32_0 = arith.constant 0 : i32
    return %arg0, %arg1, %c0_i32 : i32, i32, i32
  }
}

</mosaic_0001>

<llo_original>
// kernel: tile.8
$region0: #{tile.8}
  #allocation0 [shape = 's32[1]{0}', space=sflag, size = 0x4, scoped, tag = 'scoped memory for tile.8']
  %s0 = inlined_call_operand.vmem [shape: f32[8], index: 0, kind: input, shape index: {}]
  %s1 = inlined_call_operand.vmem [shape: f32[16,8], index: 1, kind: output, shape index: {}]
  // Predicated region
  $region2: #{tile.8} parent=0 // pred_check
    _
  $region3: #{tile.8} parent=0 // pred_check_branch
    %3 = sbr.rel (0) target = $region5
  $region4: #{tile.8} parent=0 // pred_region
    _
  $region5: #{tile.8} parent=0 // pred_fallthru
    _
  %v4 = vld [vmem:[%s0] ss:$0 sm:$0xff]
  %5 = vst [vmem:[%s1] sm:$0xff] %v4
  %s6 = scalar_lea.vmem %s1, 8
  %7 = vst [vmem:[%s6] sm:$0xff] %v4

// kernel: tile.9
$region0: #{tile.9}
  %s0 = inlined_call_operand.vmem [shape: f32[16,8], index: 0, kind: input, shape index: {}]
  %s1 = inlined_call_operand.vmem [shape: f32[1,128], index: 1, kind: output, shape index: {}]
  $region1: #{tile.9} parent=0
    #allocation0 [shape = 'u8[4096]{0}', space=vmem, size = 0x1000, scoped, tag = 'scoped mem for output reshape']
    %v2 = vld [vmem:[%s0] sm:$0x1]
    %vm3 = vcmask 64512
    %4 = vst.msk [vmem:[#allocation0] sm:$0x1] %vm3, %v2
    %s5 = scalar_lea.vmem %s0, 15
    %v6 = vld [vmem:[%s5] sm:$0x1]
    %7 = vrot.lane.b32.xlu0 %v6, 120
    %v8 = vpop.permute.xlu0 %7
    %vm9 = vcmask 1048512
    %10 = vst.msk [vmem:[#allocation0] sm:$0x1] %vm9, %v8
    %s11 = scalar_lea.vmem %s0, 14
    %v12 = vld [vmem:[%s11] sm:$0x1]
    %13 = vrot.lane.b32.xlu0 %v12, 112
    %v14 = vpop.permute.xlu0 %13
    %vm15 = vcmask 982912
    %16 = vst.msk [vmem:[#allocation0] sm:$0x1] %vm15, %v14
    %s17 = scalar_lea.vmem %s0, 13
    %v18 = vld [vmem:[%s17] sm:$0x1]
    %19 = vrot.lane.b32.xlu0 %v18, 104
    %v20 = vpop.permute.xlu0 %19
    %vm21 = vcmask 917312
    %22 = vst.msk [vmem:[#allocation0] sm:$0x1] %vm21, %v20
    %s23 = scalar_lea.vmem %s0, 12
    %v24 = vld [vmem:[%s23] sm:$0x1]
    %25 = vrot.lane.b32.xlu0 %v24, 96
    %v26 = vpop.permute.xlu0 %25
    %vm27 = vcmask 851712
    %28 = vst.msk [vmem:[#allocation0] sm:$0x1] %vm27, %v26
    %s29 = scalar_lea.vmem %s0, 11
    %v30 = vld [vmem:[%s29] sm:$0x1]
    %31 = vrot.lane.b32.xlu0 %v30, 88
    %v32 = vpop.permute.xlu0 %31
    %vm33 = vcmask 786112
    %34 = vst.msk [vmem:[#allocation0] sm:$0x1] %vm33, %v32
    %s35 = scalar_lea.vmem %s0, 10
    %v36 = vld [vmem:[%s35] sm:$0x1]
    %37 = vrot.lane.b32.xlu0 %v36, 80
    %v38 = vpop.permute.xlu0 %37
    %vm39 = vcmask 720512
    %40 = vst.msk [vmem:[#allocation0] sm:$0x1] %vm39, %v38
    %s41 = scalar_lea.vmem %s0, 9
    %v42 = vld [vmem:[%s41] sm:$0x1]
    %43 = vrot.lane.b32.xlu0 %v42, 72
    %v44 = vpop.permute.xlu0 %43
    %vm45 = vcmask 654912
    %46 = vst.msk [vmem:[#allocation0] sm:$0x1] %vm45, %v44
    %s47 = scalar_lea.vmem %s0, 8
    %v48 = vld [vmem:[%s47] sm:$0x1]
    %49 = vrot.lane.b32.xlu0 %v48, 64
    %v50 = vpop.permute.xlu0 %49
    %vm51 = vcmask 589312
    %52 = vst.msk [vmem:[#allocation0] sm:$0x1] %vm51, %v50
    %s53 = scalar_lea.vmem %s0, 7
    %v54 = vld [vmem:[%s53] sm:$0x1]
    %55 = vrot.lane.b32.xlu0 %v54, 56
    %v56 = vpop.permute.xlu0 %55
    %vm57 = vcmask 523712
    %58 = vst.msk [vmem:[#allocation0] sm:$0x1] %vm57, %v56
    %s59 = scalar_lea.vmem %s0, 6
    %v60 = vld [vmem:[%s59] sm:$0x1]
    %61 = vrot.lane.b32.xlu0 %v60, 48
    %v62 = vpop.permute.xlu0 %61
    %vm63 = vcmask 458112
    %64 = vst.msk [vmem:[#allocation0] sm:$0x1] %vm63, %v62
    %s65 = scalar_lea.vmem %s0, 5
    %v66 = vld [vmem:[%s65] sm:$0x1]
    %67 = vrot.lane.b32.xlu0 %v66, 40
    %v68 = vpop.permute.xlu0 %67
    %vm69 = vcmask 392512
    %70 = vst.msk [vmem:[#allocation0] sm:$0x1] %vm69, %v68
    %s71 = scalar_lea.vmem %s0, 4
    %v72 = vld [vmem:[%s71] sm:$0x1]
    %73 = vrot.lane.b32.xlu0 %v72, 32
    %v74 = vpop.permute.xlu0 %73
    %vm75 = vcmask 326912
    %76 = vst.msk [vmem:[#allocation0] sm:$0x1] %vm75, %v74
    %s77 = scalar_lea.vmem %s0, 3
    %v78 = vld [vmem:[%s77] sm:$0x1]
    %79 = vrot.lane.b32.xlu0 %v78, 24
    %v80 = vpop.permute.xlu0 %79
    %vm81 = vcmask 261312
    %82 = vst.msk [vmem:[#allocation0] sm:$0x1] %vm81, %v80
    %s83 = scalar_lea.vmem %s0, 2
    %v84 = vld [vmem:[%s83] sm:$0x1]
    %85 = vrot.lane.b32.xlu0 %v84, 16
    %v86 = vpop.permute.xlu0 %85
    %vm87 = vcmask 195712
    %88 = vst.msk [vmem:[#allocation0] sm:$0x1] %vm87, %v86
    %s89 = scalar_lea.vmem %s0, 1
    %v90 = vld [vmem:[%s89] sm:$0x1]
    %91 = vrot.lane.b32.xlu0 %v90, 8
    %v92 = vpop.permute.xlu0 %91
    %vm93 = vcmask 130112
    %94 = vst.msk [vmem:[#allocation0] sm:$0x1] %vm93, %v92
    %s96 = ssub.s32 2, 1
    %v97 = vld [vmem:[#allocation0] sm:%s96]
    %s99 = ssub.s32 2, 1
    %100 = vst [vmem:[%s1] sm:%s99] %v97

// kernel: conv_block_forward.1
$region0: #{conv_block_forward.1}
  #allocation0 [shape = 'u32[]', space=smem, size = 0x4, offset = 0x4, fixed_abs, tag = 'smem constant byte address 0x4 - core index']
  #allocation1 [shape = 'u32[72,128]{1,0:T(1,128)}', space=vmem, size = 0x9000, scoped, tag = 'internal scratch']
  #allocation2 [shape = 'f32[4,18,16]{2,1,0:T(8,128)}', space=vmem, size = 0xc000, scoped, tag = 'scratch operand']
  %s0 = inlined_call_operand.vmem [shape: f32[2,4,16,16], index: 0, kind: input, shape index: {}]
  %s1 = inlined_call_operand.vmem [shape: f32[192,128], index: 1, kind: input, shape index: {}]
  %s2 = inlined_call_operand.vmem [shape: f32[1,128], index: 2, kind: input, shape index: {}]
  %s3 = inlined_call_operand.vmem [shape: f32[2,16,128], index: 3, kind: output, shape index: {}]
  %s4 = sld [smem:[#allocation0]]
  $region45: #{conv_block_forward.1} parent=0
    _
  %s6 = ssub.s32 1, %s4
  %s7 = scalar_select 0, %s6, %s4
  loop: start=0, step=1, limit=6
  $region2: #{conv_block_forward.1} parent=0 // loop_pre_header
    _
  $region3: #{conv_block_forward.1} parent=0 // loop_header
    %s9 = sphi 0, %s13
    %p10 = scmp.ge.s32.totalorder %s9, 6
    %s16 = sphi 0, %s28
    %s17 = sphi 0, %s24
    %s18 = sphi 0, %s16
    %s19 = sphi 0, %s17
    %s20 = sphi 0, %s18
    %s21 = sphi 0, %s19
    %s31 = sphi 0, %s33
    %s34 = sphi 0, %s31
    %s35 = sphi 0, %s34
    %s51 = sphi 0, %s35
    %s55 = sphi 0, %s55
    %s57 = sphi 0, %s55
    %s58 = sphi 0, %s57
    %s72 = sphi 0, %s58
    %s76 = sphi 0, %s76
    %s78 = sphi 0, %s76
    %s79 = sphi 0, %s78
    %s93 = sphi 0, %s79
    %s101 = sphi 0, %s103
    %s104 = sphi 0, %s101
    %s105 = sphi 0, %s104
    %s121 = sphi 0, %s105
  $region4: #{conv_block_forward.1} parent=0 // loop_header_branch
    %12 = sbr.rel (%p10) target = $region8
  $region5: #{conv_block_forward.1} parent=0 // loop_body
    %s14 = ssub.s32 %s9, 1
    %s15 = ssub.s32 %s9, 2
    %s22 = sadd.s32 1, %s17
    %p23 = scmp.ge.s32.totalorder %s22, 2
    %s24 = scalar_select %p23, 0, %s22
    %s25 = sadd.s32 1, %s16
    %s26 = scalar_select %p23, %s25, %s16
    %p27 = scmp.ge.s32.totalorder %s26, 2
    %s28 = scalar_select %p27, 0, %s26
    %s29 = ssub.s32 %s16, %s28
    %p30 = scmp.eq.s32.totalorder %s29, 0
    %s32 = sadd.s32 %s31, 1
    %s33 = scalar_select %p30, %s31, %s32
    %p36 = pneg %p30
    %p37 = scmp.eq.s32.totalorder %s9, 3
    %p38 = por %p36, %p37
    %p39 = scmp.ne.s32.totalorder %s31, %s34
    %p40 = scmp.eq.s32.totalorder %s9, 0
    %p41 = por %p39, %p40
    %p42 = scmp.ne.s32.totalorder %s31, %s34
    %p43 = scmp.eq.s32.totalorder %s14, 3
    %p44 = por %p42, %p43
    %p45 = scmp.ne.s32.totalorder %s34, %s35
    %p46 = scmp.eq.s32.totalorder %s14, 0
    %p47 = por %p45, %p46
    %p48 = scmp.ne.s32.totalorder %s34, %s35
    %p49 = scmp.eq.s32.totalorder %s15, 3
    %p50 = por %p48, %p49
    %p52 = scmp.ne.s32.totalorder %s35, %s51
    %p53 = scmp.eq.s32.totalorder %s15, 0
    %p54 = por %p52, %p53
    %s56 = sadd.s32 %s55, 1
    %p59 = scmp.eq.s32.totalorder %s9, 3
    %p60 = scmp.ne.s32.totalorder %s55, %s57
    %p61 = scmp.eq.s32.totalorder %s9, 0
    %p62 = por %p60, %p61
    %p63 = scmp.ne.s32.totalorder %s55, %s57
    %p64 = scmp.eq.s32.totalorder %s14, 3
    %p65 = por %p63, %p64
    %p66 = scmp.ne.s32.totalorder %s57, %s58
    %p67 = scmp.eq.s32.totalorder %s14, 0
    %p68 = por %p66, %p67
    %p69 = scmp.ne.s32.totalorder %s57, %s58
    %p70 = scmp.eq.s32.totalorder %s15, 3
    %p71 = por %p69, %p70
    %p73 = scmp.ne.s32.totalorder %s58, %s72
    %p74 = scmp.eq.s32.totalorder %s15, 0
    %p75 = por %p73, %p74
    %s77 = sadd.s32 %s76, 1
    %p80 = scmp.eq.s32.totalorder %s9, 3
    %p81 = scmp.ne.s32.totalorder %s76, %s78
    %p82 = scmp.eq.s32.totalorder %s9, 0
    %p83 = por %p81, %p82
    %p84 = scmp.ne.s32.totalorder %s76, %s78
    %p85 = scmp.eq.s32.totalorder %s14, 3
    %p86 = por %p84, %p85
    %p87 = scmp.ne.s32.totalorder %s78, %s79
    %p88 = scmp.eq.s32.totalorder %s14, 0
    %p89 = por %p87, %p88
    %p90 = scmp.ne.s32.totalorder %s78, %s79
    %p91 = scmp.eq.s32.totalorder %s15, 3
    %p92 = por %p90, %p91
    %p94 = scmp.ne.s32.totalorder %s79, %s93
    %p95 = scmp.eq.s32.totalorder %s15, 0
    %p96 = por %p94, %p95
    %s97 = ssub.s32 %s16, %s28
    %s98 = ssub.s32 %s17, %s24
    %s99 = sor.u32 %s97, %s98
    %p100 = scmp.eq.s32.totalorder %s99, 0
    %s102 = sadd.s32 %s101, 1
    %s103 = scalar_select %p100, %s101, %s102
    %p106 = pneg %p100
    %p107 = scmp.eq.s32.totalorder %s9, 3
    %p108 = por %p106, %p107
    %p109 = scmp.ne.s32.totalorder %s101, %s104
    %p110 = scmp.eq.s32.totalorder %s9, 0
    %p111 = por %p109, %p110
    %p112 = scmp.ne.s32.totalorder %s101, %s104
    %p113 = scmp.eq.s32.totalorder %s14, 3
    %p114 = por %p112, %p113
    %p115 = scmp.ne.s32.totalorder %s104, %s105
    %p116 = scmp.eq.s32.totalorder %s14, 0
    %p117 = por %p115, %p116
    %p118 = scmp.ne.s32.totalorder %s104, %s105
    %p119 = scmp.eq.s32.totalorder %s15, 3
    %p120 = por %p118, %p119
    %p122 = scmp.ne.s32.totalorder %s105, %s121
    %p123 = scmp.eq.s32.totalorder %s15, 0
    %p124 = por %p122, %p123
    %p125 = scmp.le.s32.totalorder 1, %s9
    %p126 = scmp.lt.s32.totalorder %s9, 5
    %p127 = pnand %p125, %p126
    %p128 = pneg %p127
    // Predicated region
    $region9: #{conv_block_forward.1} parent=5 // pred_check
      _
    $region10: #{conv_block_forward.1} parent=5 // pred_check_branch
      %130 = sbr.rel (%p127) target = $region12
    $region11: #{conv_block_forward.1} parent=5 // pred_region
      %s131 = ssub.s32 %s9, 1
      // Predicated region
      $region13: #{conv_block_forward.1} parent=11 // pred_check
        %p132 = pneg %p68
      $region14: #{conv_block_forward.1} parent=11 // pred_check_branch
        %134 = sbr.rel (%p132) target = $region16
      $region15: #{conv_block_forward.1} parent=11 // pred_region
        _
      $region16: #{conv_block_forward.1} parent=11 // pred_fallthru
        _
      // Predicated region
      $region17: #{conv_block_forward.1} parent=11 // pred_check
        %p135 = pneg %p89
      $region18: #{conv_block_forward.1} parent=11 // pred_check_branch
        %137 = sbr.rel (%p135) target = $region20
      $region19: #{conv_block_forward.1} parent=11 // pred_region
        _
      $region20: #{conv_block_forward.1} parent=11 // pred_fallthru
        _
    $region12: #{conv_block_forward.1} parent=5 // pred_fallthru
      _
    %p138 = scmp.lt.s32.totalorder %s9, 4
    // Predicated region
    $region21: #{conv_block_forward.1} parent=5 // pred_check
      %p139 = pneg %p138
    $region22: #{conv_block_forward.1} parent=5 // pred_check_branch
      %141 = sbr.rel (%p139) target = $region24
    $region23: #{conv_block_forward.1} parent=5 // pred_region
      // Predicated region
      $region25: #{conv_block_forward.1} parent=23 // pred_check
        %p142 = pneg %p41
      $region26: #{conv_block_forward.1} parent=23 // pred_check_branch
        %144 = sbr.rel (%p142) target = $region28
      $region27: #{conv_block_forward.1} parent=23 // pred_region
        %p145 = scmp.lt.s32.totalorder %s16, 1
        %s146 = scalar_select %p145, %s16, 1
        %s147 = smul.addr %s146, 8
        %s148 = smul.addr %s147, 8
        %s149 = scalar_lea.vmem %s0, %s148
      $region28: #{conv_block_forward.1} parent=23 // pred_fallthru
        _
    $region24: #{conv_block_forward.1} parent=5 // pred_fallthru
      _
    %p150 = scmp.le.s32.totalorder 1, %s9
    %p151 = scmp.lt.s32.totalorder %s9, 5
    %p152 = pnand %p150, %p151
    %p153 = pneg %p152
    // Predicated region
    $region29: #{conv_block_forward.1} parent=5 // pred_check
      _
    $region30: #{conv_block_forward.1} parent=5 // pred_check_branch
      %155 = sbr.rel (%p152) target = $region32
    $region31: #{conv_block_forward.1} parent=5 // pred_region
      %s156 = ssub.s32 %s9, 1
      %p157 = scmp.lt.s32.totalorder %s18, 1
      %s158 = scalar_select %p157, %s18, 1
      %s159 = smul.addr %s158, 8
      %s160 = smul.addr %s159, 8
      %s161 = scalar_lea.vmem %s0, %s160
      %p162 = pneg %p47
      %p163 = pneg %p44
      %p164 = pneg %p68
      %p165 = pneg %p65
      %p166 = pneg %p89
      %p167 = pneg %p86
      %p168 = pneg %p117
      %p169 = pneg %p114
      %p170 = scmp.lt.s32.totalorder %s18, 1
      %s171 = scalar_select %p170, %s18, 1
      %p172 = scmp.lt.s32.totalorder %s19, 1
      %s173 = scalar_select %p172, %s19, 1
      %s174 = smul.addr %s171, 2
      %s175 = sadd.s32 %s173, %s174
      %s176 = smul.addr %s175, 8
      %s177 = scalar_lea.vmem %s3, %s176
      %p178 = scmp.lt.s32.totalorder %s18, 1
      %s179 = scalar_select %p178, %s18, 1
      %s180 = smul.addr %s179, 8
      %s181 = smul.addr %s180, 8
      %s182 = scalar_lea.vmem %s0, %s181
      %p183 = scmp.lt.s32.totalorder %s18, 1
      %s184 = scalar_select %p183, %s18, 1
      %p185 = scmp.lt.s32.totalorder %s19, 1
      %s186 = scalar_select %p185, %s19, 1
      %s187 = smul.addr %s184, 2
      %s188 = sadd.s32 %s186, %s187
      %s189 = smul.addr %s188, 8
      %s190 = scalar_lea.vmem %s3, %s189
      %vm191 = vcmask 122880
      %192 = vst.msk [vmem:[#allocation2] sm:$0x1] %vm191, 0.0
      %193 = vst.msk [vmem:[#allocation2 + $0x18] sm:$0x1] %vm191, 0.0
      %194 = vst.msk [vmem:[#allocation2 + $0x30] sm:$0x1] %vm191, 0.0
      %195 = vst.msk [vmem:[#allocation2 + $0x48] sm:$0x1] %vm191, 0.0
      %196 = vst.msk [vmem:[#allocation2 + $0x11] sm:$0x1] %vm191, 0.0
      %197 = vst.msk [vmem:[#allocation2 + $0x29] sm:$0x1] %vm191, 0.0
      %198 = vst.msk [vmem:[#allocation2 + $0x41] sm:$0x1] %vm191, 0.0
      %199 = vst.msk [vmem:[#allocation2 + $0x59] sm:$0x1] %vm191, 0.0
      %v200 = vld [vmem:[%s182] sm:$0xff]
      %v201 = vld [vmem:[%s182 + $0x8] sm:$0xff]
      %v202 = vld [vmem:[%s182 + $0x10] sm:$0xff]
      %v203 = vld [vmem:[%s182 + $0x18] sm:$0xff]
      %v204 = vld [vmem:[%s182 + $0x20] sm:$0xff]
      %v205 = vld [vmem:[%s182 + $0x28] sm:$0xff]
      %v206 = vld [vmem:[%s182 + $0x30] sm:$0xff]
      %v207 = vld [vmem:[%s182 + $0x38] sm:$0xff]
      %vm208 = vcmask 130048
      %209 = vst.msk [vmem:[#allocation2 + $0x1] sm:$0xff] %vm208, %v200
      %210 = vst.msk [vmem:[#allocation2 + $0x9] sm:$0xff] %vm208, %v201
      %211 = vst.msk [vmem:[#allocation2 + $0x19] sm:$0xff] %vm208, %v202
      %212 = vst.msk [vmem:[#allocation2 + $0x21] sm:$0xff] %vm208, %v203
      %213 = vst.msk [vmem:[#allocation2 + $0x31] sm:$0xff] %vm208, %v204
      %214 = vst.msk [vmem:[#allocation2 + $0x39] sm:$0xff] %vm208, %v205
      %215 = vst.msk [vmem:[#allocation2 + $0x49] sm:$0xff] %vm208, %v206
      %216 = vst.msk [vmem:[#allocation2 + $0x51] sm:$0xff] %vm208, %v207
      %s217 = smul.u32 %s19, 8
      %s218 = scalar_lea.vmem [#allocation2], %s217
      %v219 = vld [vmem:[%s218] sm:$0xff]
      %s220 = sadd.s32 %s217, 1
      %s221 = scalar_lea.vmem [#allocation2], %s220
      %v222 = vld [vmem:[%s221] sm:$0xff]
      %s223 = sadd.s32 %s217, 2
      %s224 = scalar_lea.vmem [#allocation2], %s223
      %v225 = vld [vmem:[%s224] sm:$0xff]
      %s226 = sadd.s32 %s217, 24
      %s227 = scalar_lea.vmem [#allocation2], %s226
      %v228 = vld [vmem:[%s227] sm:$0xff]
      %s229 = sadd.s32 %s220, 24
      %s230 = scalar_lea.vmem [#allocation2], %s229
      %v231 = vld [vmem:[%s230] sm:$0xff]
      %s232 = sadd.s32 %s223, 24
      %s233 = scalar_lea.vmem [#allocation2], %s232
      %v234 = vld [vmem:[%s233] sm:$0xff]
      %s235 = sadd.s32 %s217, 48
      %s236 = scalar_lea.vmem [#allocation2], %s235
      %v237 = vld [vmem:[%s236] sm:$0xff]
      %s238 = sadd.s32 %s220, 48
      %s239 = scalar_lea.vmem [#allocation2], %s238
      %v240 = vld [vmem:[%s239] sm:$0xff]
      %s241 = sadd.s32 %s223, 48
      %s242 = scalar_lea.vmem [#allocation2], %s241
      %v243 = vld [vmem:[%s242] sm:$0xff]
      %s244 = sadd.s32 %s217, 72
      %s245 = scalar_lea.vmem [#allocation2], %s244
      %v246 = vld [vmem:[%s245] sm:$0xff]
      %s247 = sadd.s32 %s220, 72
      %s248 = scalar_lea.vmem [#allocation2], %s247
      %v249 = vld [vmem:[%s248] sm:$0xff]
      %s250 = sadd.s32 %s223, 72
      %s251 = scalar_lea.vmem [#allocation2], %s250
      %v252 = vld [vmem:[%s251] sm:$0xff]
      %254 = vrot.lane.b32.xlu0 %v222, 16
      %v255 = vpop.permute.xlu0 %254
      %258 = vrot.lane.b32.xlu0 %v225, 32
      %v259 = vpop.permute.xlu0 %258
      %262 = vrot.lane.b32.xlu0 %v228, 48
      %v263 = vpop.permute.xlu0 %262
      %266 = vrot.lane.b32.xlu0 %v231, 64
      %v267 = vpop.permute.xlu0 %266
      %270 = vrot.lane.b32.xlu0 %v234, 80
      %v271 = vpop.permute.xlu0 %270
      %274 = vrot.lane.b32.xlu0 %v237, 96
      %v275 = vpop.permute.xlu0 %274
      %278 = vrot.lane.b32.xlu0 %v240, 112
      %v279 = vpop.permute.xlu0 %278
      %282 = vrot.lane.b32.xlu0 %v246, 16
      %v283 = vpop.permute.xlu0 %282
      %286 = vrot.lane.b32.xlu0 %v249, 32
      %v287 = vpop.permute.xlu0 %286
      %290 = vrot.lane.b32.xlu0 %v252, 48
      %v291 = vpop.permute.xlu0 %290
      %v293 = vsel %vm208, %v219, %v255
      %vm294 = vcmask 261120
      %v295 = vsel %vm294, %v293, %v259
      %vm296 = vcmask 392192
      %v297 = vsel %vm296, %v295, %v263
      %vm298 = vcmask 523264
      %v299 = vsel %vm298, %v297, %v267
      %vm300 = vcmask 654336
      %v301 = vsel %vm300, %v299, %v271
      %vm302 = vcmask 785408
      %v303 = vsel %vm302, %v301, %v275
      %vm304 = vcmask 916480
      %v305 = vsel %vm304, %v303, %v279
      %v306 = vsel %vm208, %v243, %v283
      %v307 = vsel %vm294, %v306, %v287
      %v308 = vsel %vm296, %v307, %v291
      %v309 = vld [vmem:[%s1] sm:$0xff]
      %v310 = vld [vmem:[%s1 + $0x8] sm:$0xff]
      %v311 = vld [vmem:[%s1 + $0x10] sm:$0xff]
      %v312 = vld [vmem:[%s1 + $0x18] sm:$0xff]
      %v313 = vld [vmem:[%s1 + $0x20] sm:$0xff]
      %v314 = vld [vmem:[%s1 + $0x28] sm:$0xff]
      %v315 = vld [vmem:[%s1 + $0x30] sm:$0xff]
      %v316 = vld [vmem:[%s1 + $0x38] sm:$0xff]
      %v317 = vld [vmem:[%s1 + $0x40] sm:$0xff]
      %v318 = vld [vmem:[%s1 + $0x48] sm:$0xff]
      %v319 = vld [vmem:[%s1 + $0x50] sm:$0xff]
      %v320 = vld [vmem:[%s1 + $0x58] sm:$0xff]
      %v321 = vld [vmem:[%s1 + $0x60] sm:$0xff]
      %v322 = vld [vmem:[%s1 + $0x68] sm:$0xff]
      %v323 = vld [vmem:[%s1 + $0x70] sm:$0xff]
      %v324 = vld [vmem:[%s1 + $0x78] sm:$0xff]
      %v325 = vld [vmem:[%s1 + $0x80] sm:$0xff]
      %v326 = vld [vmem:[%s1 + $0x88] sm:$0xff]
      %v327 = vld [vmem:[%s1 + $0x90] sm:$0xff]
      %v328 = vld [vmem:[%s1 + $0x98] sm:$0xff]
      %v329 = vld [vmem:[%s1 + $0xa0] sm:$0xff]
      %v330 = vld [vmem:[%s1 + $0xa8] sm:$0xff]
      %v331 = vld [vmem:[%s1 + $0xb0] sm:$0xff]
      %v332 = vld [vmem:[%s1 + $0xb8] sm:$0xff]
      %v333 = vld [vmem:[%s2] sm:$0x1]
      %v335 = vperm.slane %v333, 0
      %v338 = vsel %vm298, %v308, 0
      %340 = vmatpush.msra.mxu0 %v324
      %341 = vmatpush.msra.mxu0 %v323
      %342 = vmatpush.msra.mxu0 %v322
      %343 = vmatpush.msra.mxu0 %v321
      %344 = vmatpush.msra.mxu0 %v320
      %345 = vmatpush.msra.mxu0 %v319
      %346 = vmatpush.msra.mxu0 %v318
      %347 = vmatpush.msra.mxu0 %v317
      %348 = vmatpush.msra.mxu0 %v316
      %349 = vmatpush.msra.mxu0 %v315
      %350 = vmatpush.msra.mxu0 %v314
      %351 = vmatpush.msra.mxu0 %v313
      %352 = vmatpush.msra.mxu0 %v312
      %353 = vmatpush.msra.mxu0 %v311
      %354 = vmatpush.msra.mxu0 %v310
      %355 = vmatpush.msra.mxu0 %v309
      %356 = vmatmul.f32.gmra.mxu0 %v305
      %v357 = vpop.f32.mrf.mxu0
      %v358 = vadd.f32 %v335, %v357
      %359 = vdwg.mxu0
      %360 = vmatpush.msra.mxu0 0.0
      %361 = vmatpush.msra.mxu0 0.0
      %362 = vmatpush.msra.mxu0 0.0
      %363 = vmatpush.msra.mxu0 0.0
      %364 = vmatpush.msra.mxu0 0.0
      %365 = vmatpush.msra.mxu0 0.0
      %366 = vmatpush.msra.mxu0 0.0
      %367 = vmatpush.msra.mxu0 0.0
      %368 = vmatpush.msra.mxu0 %v332
      %369 = vmatpush.msra.mxu0 %v331
      %370 = vmatpush.msra.mxu0 %v330
      %371 = vmatpush.msra.mxu0 %v329
      %372 = vmatpush.msra.mxu0 %v328
      %373 = vmatpush.msra.mxu0 %v327
      %374 = vmatpush.msra.mxu0 %v326
      %375 = vmatpush.msra.mxu0 %v325
      %376 = vmatmul.f32.gmra.mxu0 %v338
      %v377 = vpop.f32.mrf.mxu0
      %v378 = vadd.f32 %v358, %v377
      %379 = vdwg.mxu0
      %v380 = vmul.f32 %v378, 0.01
      %v381 = vmax.f32 %v378, %v380
      %382 = vst [vmem:[%s190] sm:$0xff] %v381
      %p383 = scmp.lt.s32.totalorder %s18, 1
      %s384 = scalar_select %p383, %s18, 1
      %p385 = scmp.lt.s32.totalorder %s19, 1
      %s386 = scalar_select %p385, %s19, 1
      %s387 = smul.addr %s384, 2
      %s388 = sadd.s32 %s386, %s387
      %s389 = smul.addr %s388, 8
      %s390 = scalar_lea.vmem %s3, %s389
      // Predicated region
      $region33: #{conv_block_forward.1} parent=31 // pred_check
        %p391 = pneg %p114
      $region34: #{conv_block_forward.1} parent=31 // pred_check_branch
        %393 = sbr.rel (%p391) target = $region36
      $region35: #{conv_block_forward.1} parent=31 // pred_region
        _
      $region36: #{conv_block_forward.1} parent=31 // pred_fallthru
        _
    $region32: #{conv_block_forward.1} parent=5 // pred_fallthru
      _
    %p394 = scmp.le.s32.totalorder 2, %s9
    // Predicated region
    $region37: #{conv_block_forward.1} parent=5 // pred_check
      %p395 = pneg %p394
    $region38: #{conv_block_forward.1} parent=5 // pred_check_branch
      %397 = sbr.rel (%p395) target = $region40
    $region39: #{conv_block_forward.1} parent=5 // pred_region
      %s398 = ssub.s32 %s9, 2
      // Predicated region
      $region41: #{conv_block_forward.1} parent=39 // pred_check
        %p399 = pneg %p120
      $region42: #{conv_block_forward.1} parent=39 // pred_check_branch
        %401 = sbr.rel (%p399) target = $region44
      $region43: #{conv_block_forward.1} parent=39 // pred_region
        %p402 = scmp.lt.s32.totalorder %s20, 1
        %s403 = scalar_select %p402, %s20, 1
        %p404 = scmp.lt.s32.totalorder %s21, 1
        %s405 = scalar_select %p404, %s21, 1
        %s406 = smul.addr %s403, 2
        %s407 = sadd.s32 %s405, %s406
        %s408 = smul.addr %s407, 8
        %s409 = scalar_lea.vmem %s3, %s408
      $region44: #{conv_block_forward.1} parent=39 // pred_fallthru
        _
    $region40: #{conv_block_forward.1} parent=5 // pred_fallthru
      _
  $region6: #{conv_block_forward.1} parent=0 // loop_footer
    %s13 = sadd.s32 1, %s9
  $region7: #{conv_block_forward.1} parent=0 // loop_footer_branch
    %8 = sbr.rel target = $region3
  $region8: #{conv_block_forward.1} parent=0 // loop_exit
    _

</llo_original>
